<compile_context>
chip_gen: v7x
topology: tpu7x:2x2x1
jax: 0.10.0
libtpu: 0.0.40
codegen_flags: <defaults>
</compile_context>

<pallas_src>
import functools

import jax
import jax.numpy as jnp
from jax.experimental import pallas as pl
from jax.experimental.pallas import tpu as pltpu


# Hidden layer widths shared by actor & critic (from the nn.Sequential defs).
HIDDEN = (128, 64, 64, 32)
N_LAYERS = len(HIDDEN) + 1          # 5 linear layers per branch
WIDTH = 256                         # merged hidden lane width: actor [0,128), critic [128,256)
CRITIC_OFF = 128                    # lane offset where critic activations live
OUT_WIDTH = 128                     # lane-dense output slab width (mean lanes [0,A), value lane A)


def _round_up(x, m):
    return ((x + m - 1) // m) * m


# --------------------------------------------------------------------------- #
# Kernel                                                                       #
# --------------------------------------------------------------------------- #
def _actor_critic_kernel(x_ref, w0_ref, wmid_ref, wlast_ref, bhid_ref, blast_ref,
                         out_ref):
    """x_ref:    [Bt, S]        raw state tile (any float dtype)
       w0_ref:   [S, 256]       bf16 merged layer-0 weight (actor cols [0,128), critic [128,256))
       wmid_ref: [3, 256, 256]  bf16 block-diagonal merged weights for layers 1..3
       wlast_ref:[256, 128]     bf16 merged final weight (actor -> cols [0,A), critic -> col A)
       bhid_ref: [4, 1, 256]    f32 merged biases for layers 0..3
       blast_ref:[1, 128]       f32 merged final bias
       out_ref:  [Bt, 128]      bf16 packed output (lanes [0,A) = mean, lane A = value)"""
    # Layer 0: shared state rows feed both branches.
    h = jnp.dot(x_ref[...].astype(jnp.bfloat16), w0_ref[...],
                preferred_element_type=jnp.float32) + bhid_ref[0]
    h = jnp.maximum(h, 0.0)
    # Layers 1..3: block-diagonal merged matmuls (static unroll).
    for l in range(N_LAYERS - 2):
        h = jnp.dot(h.astype(jnp.bfloat16), wmid_ref[l],
                    preferred_element_type=jnp.float32) + bhid_ref[l + 1]
        h = jnp.maximum(h, 0.0)
    # Final layer: merged heads (32->A actor, 32->1 critic), no activation.
    out = jnp.dot(h.astype(jnp.bfloat16), wlast_ref[...],
                  preferred_element_type=jnp.float32) + blast_ref[...]
    out_ref[...] = out.astype(out_ref.dtype)


# --------------------------------------------------------------------------- #
# Parameter init & packing                                                     #
# --------------------------------------------------------------------------- #
def init_params(key, state_dim, action_dim, dtype=jnp.float32):
    """PyTorch-default-style init (U[-1/sqrt(fan_in), 1/sqrt(fan_in)]).
    Returns per-branch lists [w1, b1, ..., w5, b5] with w: [in,out], b: [1,out]."""
    def branch(key, out_last):
        dims = (state_dim,) + HIDDEN + (out_last,)
        params = []
        for i in range(len(dims) - 1):
            fan_in, fan_out = dims[i], dims[i + 1]
            key, kw, kb = jax.random.split(key, 3)
            bound = 1.0 / jnp.sqrt(jnp.asarray(fan_in, dtype))
            w = jax.random.uniform(kw, (fan_in, fan_out), dtype, -bound, bound)
            b = jax.random.uniform(kb, (1, fan_out), dtype, -bound, bound)
            params += [w, b]
        return key, params

    key, actor_params = branch(key, action_dim)
    key, critic_params = branch(key, 1)
    log_std = jnp.zeros((action_dim,), dtype)           # unused in forward()
    return actor_params, critic_params, log_std


def pack_params(actor_params, critic_params, action_dim, weight_dtype=jnp.bfloat16):
    """Pack both branches into merged block-diagonal slabs.

    Returns (w0 [S,256], wmid [3,256,256], wlast [256,128], bhid [4,1,256] f32,
    blast [1,128] f32).  Unused entries are zero, so padded lanes stay exactly 0
    through the ReLU layers."""
    assert action_dim + 1 <= OUT_WIDTH, "action_dim must be < 128"
    state_dim = actor_params[0].shape[0]
    f32 = jnp.float32

    w0 = jnp.zeros((state_dim, WIDTH), f32)
    wmid = jnp.zeros((N_LAYERS - 2, WIDTH, WIDTH), f32)
    wlast = jnp.zeros((WIDTH, OUT_WIDTH), f32)
    bhid = jnp.zeros((N_LAYERS - 1, 1, WIDTH), f32)
    blast = jnp.zeros((1, OUT_WIDTH), f32)

    # Layer 0: both branches read the shared state rows.
    wa, ba = actor_params[0], actor_params[1]
    wc, bc = critic_params[0], critic_params[1]
    w0 = w0.at[:, 0:HIDDEN[0]].set(wa)
    w0 = w0.at[:, CRITIC_OFF:CRITIC_OFF + HIDDEN[0]].set(wc)
    bhid = bhid.at[0, 0, 0:HIDDEN[0]].set(ba.reshape(-1))
    bhid = bhid.at[0, 0, CRITIC_OFF:CRITIC_OFF + HIDDEN[0]].set(bc.reshape(-1))

    # Layers 1..3: block-diagonal (actor top-left, critic offset by 128 in rows & cols).
    for l in range(1, N_LAYERS - 1):
        wa, ba = actor_params[2 * l], actor_params[2 * l + 1]
        wc, bc = critic_params[2 * l], critic_params[2 * l + 1]
        in_d, out_d = wa.shape
        wmid = wmid.at[l - 1, 0:in_d, 0:out_d].set(wa)
        wmid = wmid.at[l - 1, CRITIC_OFF:CRITIC_OFF + in_d,
                       CRITIC_OFF:CRITIC_OFF + out_d].set(wc)
        bhid = bhid.at[l, 0, 0:out_d].set(ba.reshape(-1))
        bhid = bhid.at[l, 0, CRITIC_OFF:CRITIC_OFF + out_d].set(bc.reshape(-1))

    # Final layer: actor 32->A into cols [0,A); critic 32->1 into col A.
    wa, ba = actor_params[-2], actor_params[-1]
    wc, bc = critic_params[-2], critic_params[-1]
    in_h = wa.shape[0]
    wlast = wlast.at[0:in_h, 0:action_dim].set(wa)
    wlast = wlast.at[CRITIC_OFF:CRITIC_OFF + in_h, action_dim:action_dim + 1].set(wc)
    blast = blast.at[0, 0:action_dim].set(ba.reshape(-1))
    blast = blast.at[0, action_dim].set(bc.reshape(-1)[0])

    return (w0.astype(weight_dtype), wmid.astype(weight_dtype),
            wlast.astype(weight_dtype), bhid, blast)


# --------------------------------------------------------------------------- #
# Forward wrapper                                                              #
# --------------------------------------------------------------------------- #
@functools.partial(jax.jit, static_argnames=("action_dim", "batch_tile"))
def actor_critic_forward(state, params, *, action_dim, batch_tile=1024):
    """Returns (action_mean [B, A], state_value [B, 1]) in state.dtype."""
    w0, wmid, wlast, bhid, blast = params
    B, S = state.shape

    # Batch tiling: >= 2 grid programs (so v7x's two TensorCores both get work),
    # tile rounded to 8 sublanes and chosen to minimize batch-padding waste.
    n_prog = max(2, pl.cdiv(B, batch_tile))
    bt = _round_up(pl.cdiv(B, n_prog), 8)
    b_pad = bt * n_prog

    # Only the (small) batch-row pad is materialized; lanes stay at the raw S.
    x = state if b_pad == B else jnp.pad(state, ((0, b_pad - B), (0, 0)))

    out = pl.pallas_call(
        _actor_critic_kernel,
        out_shape=jax.ShapeDtypeStruct((b_pad, OUT_WIDTH), jnp.bfloat16),
        grid=(n_prog,),
        in_specs=[
            pl.BlockSpec((bt, S), lambda i: (i, 0)),                          # state tile
            pl.BlockSpec((S, WIDTH), lambda i: (0, 0)),                       # layer-0 W (resident)
            pl.BlockSpec((N_LAYERS - 2, WIDTH, WIDTH), lambda i: (0, 0, 0)),  # layers 1..3 W
            pl.BlockSpec((WIDTH, OUT_WIDTH), lambda i: (0, 0)),               # final W
            pl.BlockSpec((N_LAYERS - 1, 1, WIDTH), lambda i: (0, 0, 0)),      # biases 0..3
            pl.BlockSpec((1, OUT_WIDTH), lambda i: (0, 0)),                   # final bias
        ],
        out_specs=pl.BlockSpec((bt, OUT_WIDTH), lambda i: (i, 0)),            # lane-dense bf16 out
        compiler_params=pltpu.CompilerParams(
            dimension_semantics=("parallel",),
        ),
    )(x, w0, wmid, wlast, bhid, blast)

    mean = out[:B, :action_dim].astype(state.dtype)
    value = out[:B, action_dim:action_dim + 1].astype(state.dtype)
    return mean, value


# --------------------------------------------------------------------------- #
# Plain-JAX f32 reference (unmerged branches) for correctness checking        #
# --------------------------------------------------------------------------- #
def reference_forward(state, actor_params, critic_params):
    def mlp(h, params):
        n_layers = len(params) // 2
        for i in range(n_layers):
            h = h @ params[2 * i] + params[2 * i + 1]
            if i < n_layers - 1:
                h = jnp.maximum(h, 0.0)
        return h
    return mlp(state, actor_params), mlp(state, critic_params)


if __name__ == "__main__":
    key = jax.random.PRNGKey(0)
    batch, state_dim, action_dim = 8, 16, 4

    key, kx = jax.random.split(key)
    state = jax.random.normal(kx, (batch, state_dim), jnp.float32)

    actor_params, critic_params, log_std = init_params(key, state_dim, action_dim)
    params = pack_params(actor_params, critic_params, action_dim)

    mean, value = actor_critic_forward(state, params, action_dim=action_dim)
    jax.block_until_ready((mean, value))

    ref_mean, ref_value = reference_forward(state, actor_params, critic_params)
    assert mean.shape == (batch, action_dim)
    assert value.shape == (batch, 1)
    # bf16 storage / f32 accumulation vs. pure-f32 reference: loose tolerance.
    assert jnp.allclose(mean, ref_mean, atol=3e-2, rtol=3e-2)
    assert jnp.allclose(value, ref_value, atol=3e-2, rtol=3e-2)

    # TODO(synk): act()/evaluate() MultivariateNormal sampling, log_prob and
    # entropy are distribution utilities on top of forward(); only forward()
    # is kernelized here (log_std is unused in forward()).
    print("KERNEL_OK")
</pallas_src>

<mosaic_0001>
module attributes {stable_mosaic.version = 11 : i64} {
  func.func @_actor_critic_kernel(%arg0: i32, %arg1: memref<8x16xf32, #tpu.memory_space<vmem>>, %arg2: memref<16x256xbf16, #tpu.memory_space<vmem>>, %arg3: memref<3x256x256xbf16, #tpu.memory_space<vmem>>, %arg4: memref<256x128xbf16, #tpu.memory_space<vmem>>, %arg5: memref<4x1x256xf32, #tpu.memory_space<vmem>>, %arg6: memref<1x128xf32, #tpu.memory_space<vmem>>, %arg7: memref<8x128xbf16, #tpu.memory_space<vmem>>) attributes {dimension_semantics = [#tpu.dimension_semantics<parallel>], iteration_bounds = array<i64: 2>, scalar_prefetch = 0 : i64, scratch_operands = 0 : i64, tpu.core_type = #tpu.core_type<tc>, window_params = [{transform_indices = @transform_0, window_bounds = array<i64: 8, 16>}, {pipeline_mode = #tpu.pipeline_mode<synchronous>, transform_indices = @transform_1, window_bounds = array<i64: 16, 256>}, {pipeline_mode = #tpu.pipeline_mode<synchronous>, transform_indices = @transform_2, window_bounds = array<i64: 3, 256, 256>}, {pipeline_mode = #tpu.pipeline_mode<synchronous>, transform_indices = @transform_3, window_bounds = array<i64: 256, 128>}, {pipeline_mode = #tpu.pipeline_mode<synchronous>, transform_indices = @transform_4, window_bounds = array<i64: 4, 1, 256>}, {pipeline_mode = #tpu.pipeline_mode<synchronous>, transform_indices = @transform_5, window_bounds = array<i64: 1, 128>}, {transform_indices = @transform_6, window_bounds = array<i64: 8, 128>}]} {
    %c0 = arith.constant 0 : index
    %c0_0 = arith.constant 0 : index
    %0 = vector.load %arg1[%c0, %c0_0] : memref<8x16xf32, #tpu.memory_space<vmem>>, vector<8x16xf32>
    %1 = arith.truncf %0 : vector<8x16xf32> to vector<8x16xbf16>
    %c0_1 = arith.constant 0 : index
    %c0_2 = arith.constant 0 : index
    %2 = vector.load %arg2[%c0_1, %c0_2] : memref<16x256xbf16, #tpu.memory_space<vmem>>, vector<16x256xbf16>
    %cst = arith.constant dense<0.000000e+00> : vector<8x256xf32>
    %3 = tpu.matmul %1, %2, %cst {dimension_numbers = #tpu.dot_dimension_numbers<[1], [0], [0], [1], [0, 0, 1, 1], [], []>} : vector<8x16xbf16>, vector<16x256xbf16>, vector<8x256xf32> -> vector<8x256xf32>
    %c0_3 = arith.constant 0 : index
    %c0_4 = arith.constant 0 : index
    %c0_5 = arith.constant 0 : index
    %4 = vector.load %arg5[%c0_3, %c0_4, %c0_5] : memref<4x1x256xf32, #tpu.memory_space<vmem>>, vector<1x1x256xf32>
    %5 = vector.shape_cast %4 : vector<1x1x256xf32> to vector<1x256xf32>
    %6 = vector.broadcast %5 : vector<1x256xf32> to vector<8x256xf32>
    %7 = arith.addf %3, %6 : vector<8x256xf32>
    %cst_6 = arith.constant 0.000000e+00 : f32
    %8 = vector.broadcast %cst_6 : f32 to vector<8x256xf32>
    %9 = arith.maximumf %7, %8 : vector<8x256xf32>
    %10 = arith.truncf %9 : vector<8x256xf32> to vector<8x256xbf16>
    %c0_7 = arith.constant 0 : index
    %c0_8 = arith.constant 0 : index
    %c0_9 = arith.constant 0 : index
    %11 = vector.load %arg3[%c0_7, %c0_8, %c0_9] : memref<3x256x256xbf16, #tpu.memory_space<vmem>>, vector<1x256x256xbf16>
    %12 = vector.shape_cast %11 : vector<1x256x256xbf16> to vector<256x256xbf16>
    %cst_10 = arith.constant dense<0.000000e+00> : vector<8x256xf32>
    %13 = tpu.matmul %10, %12, %cst_10 {dimension_numbers = #tpu.dot_dimension_numbers<[1], [0], [0], [1], [0, 0, 1, 1], [], []>} : vector<8x256xbf16>, vector<256x256xbf16>, vector<8x256xf32> -> vector<8x256xf32>
    %c1 = arith.constant 1 : index
    %c0_11 = arith.constant 0 : index
    %c0_12 = arith.constant 0 : index
    %14 = vector.load %arg5[%c1, %c0_11, %c0_12] : memref<4x1x256xf32, #tpu.memory_space<vmem>>, vector<1x1x256xf32>
    %15 = vector.shape_cast %14 : vector<1x1x256xf32> to vector<1x256xf32>
    %16 = vector.broadcast %15 : vector<1x256xf32> to vector<8x256xf32>
    %17 = arith.addf %13, %16 : vector<8x256xf32>
    %cst_13 = arith.constant 0.000000e+00 : f32
    %18 = vector.broadcast %cst_13 : f32 to vector<8x256xf32>
    %19 = arith.maximumf %17, %18 : vector<8x256xf32>
    %20 = arith.truncf %19 : vector<8x256xf32> to vector<8x256xbf16>
    %c1_14 = arith.constant 1 : index
    %c0_15 = arith.constant 0 : index
    %c0_16 = arith.constant 0 : index
    %21 = vector.load %arg3[%c1_14, %c0_15, %c0_16] : memref<3x256x256xbf16, #tpu.memory_space<vmem>>, vector<1x256x256xbf16>
    %22 = vector.shape_cast %21 : vector<1x256x256xbf16> to vector<256x256xbf16>
    %cst_17 = arith.constant dense<0.000000e+00> : vector<8x256xf32>
    %23 = tpu.matmul %20, %22, %cst_17 {dimension_numbers = #tpu.dot_dimension_numbers<[1], [0], [0], [1], [0, 0, 1, 1], [], []>} : vector<8x256xbf16>, vector<256x256xbf16>, vector<8x256xf32> -> vector<8x256xf32>
    %c2 = arith.constant 2 : index
    %c0_18 = arith.constant 0 : index
    %c0_19 = arith.constant 0 : index
    %24 = vector.load %arg5[%c2, %c0_18, %c0_19] : memref<4x1x256xf32, #tpu.memory_space<vmem>>, vector<1x1x256xf32>
    %25 = vector.shape_cast %24 : vector<1x1x256xf32> to vector<1x256xf32>
    %26 = vector.broadcast %25 : vector<1x256xf32> to vector<8x256xf32>
    %27 = arith.addf %23, %26 : vector<8x256xf32>
    %cst_20 = arith.constant 0.000000e+00 : f32
    %28 = vector.broadcast %cst_20 : f32 to vector<8x256xf32>
    %29 = arith.maximumf %27, %28 : vector<8x256xf32>
    %30 = arith.truncf %29 : vector<8x256xf32> to vector<8x256xbf16>
    %c2_21 = arith.constant 2 : index
    %c0_22 = arith.constant 0 : index
    %c0_23 = arith.constant 0 : index
    %31 = vector.load %arg3[%c2_21, %c0_22, %c0_23] : memref<3x256x256xbf16, #tpu.memory_space<vmem>>, vector<1x256x256xbf16>
    %32 = vector.shape_cast %31 : vector<1x256x256xbf16> to vector<256x256xbf16>
    %cst_24 = arith.constant dense<0.000000e+00> : vector<8x256xf32>
    %33 = tpu.matmul %30, %32, %cst_24 {dimension_numbers = #tpu.dot_dimension_numbers<[1], [0], [0], [1], [0, 0, 1, 1], [], []>} : vector<8x256xbf16>, vector<256x256xbf16>, vector<8x256xf32> -> vector<8x256xf32>
    %c3 = arith.constant 3 : index
    %c0_25 = arith.constant 0 : index
    %c0_26 = arith.constant 0 : index
    %34 = vector.load %arg5[%c3, %c0_25, %c0_26] : memref<4x1x256xf32, #tpu.memory_space<vmem>>, vector<1x1x256xf32>
    %35 = vector.shape_cast %34 : vector<1x1x256xf32> to vector<1x256xf32>
    %36 = vector.broadcast %35 : vector<1x256xf32> to vector<8x256xf32>
    %37 = arith.addf %33, %36 : vector<8x256xf32>
    %cst_27 = arith.constant 0.000000e+00 : f32
    %38 = vector.broadcast %cst_27 : f32 to vector<8x256xf32>
    %39 = arith.maximumf %37, %38 : vector<8x256xf32>
    %40 = arith.truncf %39 : vector<8x256xf32> to vector<8x256xbf16>
    %c0_28 = arith.constant 0 : index
    %c0_29 = arith.constant 0 : index
    %41 = vector.load %arg4[%c0_28, %c0_29] : memref<256x128xbf16, #tpu.memory_space<vmem>>, vector<256x128xbf16>
    %cst_30 = arith.constant dense<0.000000e+00> : vector<8x128xf32>
    %42 = tpu.matmul %40, %41, %cst_30 {dimension_numbers = #tpu.dot_dimension_numbers<[1], [0], [0], [1], [0, 0, 1, 1], [], []>} : vector<8x256xbf16>, vector<256x128xbf16>, vector<8x128xf32> -> vector<8x128xf32>
    %c0_31 = arith.constant 0 : index
    %c0_32 = arith.constant 0 : index
    %43 = vector.load %arg6[%c0_31, %c0_32] : memref<1x128xf32, #tpu.memory_space<vmem>>, vector<1x128xf32>
    %44 = vector.broadcast %43 : vector<1x128xf32> to vector<8x128xf32>
    %45 = arith.addf %42, %44 : vector<8x128xf32>
    %46 = arith.truncf %45 : vector<8x128xf32> to vector<8x128xbf16>
    %c0_33 = arith.constant 0 : index
    %c0_34 = arith.constant 0 : index
    %47 = vector.load %arg7[%c0_33, %c0_34] : memref<8x128xbf16, #tpu.memory_space<vmem>>, vector<8x128xbf16>
    tpu.vector_store %arg7[%c0_33, %c0_34], %46 {strides = array<i32>} : memref<8x128xbf16, #tpu.memory_space<vmem>>, vector<8x128xbf16>,
    return
  }
  func.func @transform_0(%arg0: i32) -> (i32, i32) {
    %c0_i32 = arith.constant 0 : i32
    %c0_i32_0 = arith.constant 0 : i32
    return %arg0, %c0_i32 : i32, i32
  }
  func.func @transform_1(%arg0: i32) -> (i32, i32) {
    %c0_i32 = arith.constant 0 : i32
    %c0_i32_0 = arith.constant 0 : i32
    %c0_i32_1 = arith.constant 0 : i32
    return %c0_i32, %c0_i32_0 : i32, i32
  }
  func.func @transform_2(%arg0: i32) -> (i32, i32, i32) {
    %c0_i32 = arith.constant 0 : i32
    %c0_i32_0 = arith.constant 0 : i32
    %c0_i32_1 = arith.constant 0 : i32
    %c0_i32_2 = arith.constant 0 : i32
    return %c0_i32, %c0_i32_0, %c0_i32_1 : i32, i32, i32
  }
  func.func @transform_3(%arg0: i32) -> (i32, i32) {
    %c0_i32 = arith.constant 0 : i32
    %c0_i32_0 = arith.constant 0 : i32
    %c0_i32_1 = arith.constant 0 : i32
    return %c0_i32, %c0_i32_0 : i32, i32
  }
  func.func @transform_4(%arg0: i32) -> (i32, i32, i32) {
    %c0_i32 = arith.constant 0 : i32
    %c0_i32_0 = arith.constant 0 : i32
    %c0_i32_1 = arith.constant 0 : i32
    %c0_i32_2 = arith.constant 0 : i32
    return %c0_i32, %c0_i32_0, %c0_i32_1 : i32, i32, i32
  }
  func.func @transform_5(%arg0: i32) -> (i32, i32) {
    %c0_i32 = arith.constant 0 : i32
    %c0_i32_0 = arith.constant 0 : i32
    %c0_i32_1 = arith.constant 0 : i32
    return %c0_i32, %c0_i32_0 : i32, i32
  }
  func.func @transform_6(%arg0: i32) -> (i32, i32) {
    %c0_i32 = arith.constant 0 : i32
    %c0_i32_0 = arith.constant 0 : i32
    return %arg0, %c0_i32 : i32, i32
  }
}

</mosaic_0001>

<llo_original>
// kernel: actor_critic_forward.1
$region0: #{actor_critic_forward.1}
  #allocation0 [shape = 'u32[]', space=smem, size = 0x4, offset = 0x4, fixed_abs, tag = 'smem constant byte address 0x4 - core index']
  #allocation1 [shape = 'u32[144,128]{1,0:T(1,128)}', space=vmem, size = 0x12000, scoped, tag = 'internal scratch']
  %s0 = inlined_call_operand.vmem [shape: f32[16,16], index: 0, kind: input, shape index: {}]
  %s1 = inlined_call_operand.vmem [shape: bf16[16,256], index: 1, kind: input, shape index: {}]
  %s2 = inlined_call_operand.hbm [shape: bf16[3,256,256], index: 2, kind: input, shape index: {}]
  %s3 = inlined_call_operand.hbm [shape: bf16[256,128], index: 3, kind: input, shape index: {}]
  %s4 = inlined_call_operand.vmem [shape: f32[4,1,256], index: 4, kind: input, shape index: {}]
  %s5 = inlined_call_operand.vmem [shape: f32[1,128], index: 5, kind: input, shape index: {}]
  %s6 = inlined_call_operand.vmem [shape: bf16[16,128], index: 6, kind: output, shape index: {}]
  %s7 = sld [smem:[#allocation0]]
  $region65: #{actor_critic_forward.1} parent=0
    _
  %s9 = ssub.s32 1, %s7
  %s10 = scalar_select 0, %s9, %s7
  $region1: #{actor_critic_forward.1} parent=0
    #allocation2 [shape = 'u8[393216]{0}', space=vmem, size = 0x60000, scoped, tag = 'input window, operand 2, single buffered']
    #allocation3 [shape = 's32[2]{0}', space=sflag, size = 0x8, scoped, tag = 'scoped memory for actor_critic_forward.1']
    #allocation4 [shape = 'u8[65536]{0}', space=vmem, size = 0x10000, scoped, tag = 'input window, operand 3, single buffered']
    #allocation5 [shape = 's32[1]{0}', space=sflag, size = 0x4, scoped, tag = 'scoped memory for actor_critic_forward.1']
    %11 = vsyncpa [#allocation3], 0
    %12 = vsyncpa [#allocation5], 0
    loop: start=0, step=1, limit=4
    $region2: #{actor_critic_forward.1} parent=1 // loop_pre_header
      _
    $region3: #{actor_critic_forward.1} parent=1 // loop_header
      %s14 = sphi 0, %s18
      %p15 = scmp.ge.s32.totalorder %s14, 4
      %s24 = sphi 0, %s26
      %s27 = sphi 0, %s24
      %s28 = sphi 0, %s27
      %s44 = sphi 0, %s28
      %s48 = sphi 0, %s48
      %s50 = sphi 0, %s48
      %s51 = sphi 0, %s50
      %s65 = sphi 0, %s51
      %s69 = sphi 0, %s69
      %s71 = sphi 0, %s69
      %s72 = sphi 0, %s71
      %s86 = sphi 0, %s72
      %s90 = sphi 0, %s90
      %s92 = sphi 0, %s90
      %s93 = sphi 0, %s92
      %s107 = sphi 0, %s93
      %s111 = sphi 0, %s111
      %s113 = sphi 0, %s111
      %s114 = sphi 0, %s113
      %s128 = sphi 0, %s114
      %s132 = sphi 0, %s132
      %s134 = sphi 0, %s132
      %s135 = sphi 0, %s134
      %s149 = sphi 0, %s135
      %s155 = sphi 0, %s157
      %s158 = sphi 0, %s155
      %s159 = sphi 0, %s158
      %s175 = sphi 0, %s159
    $region4: #{actor_critic_forward.1} parent=1 // loop_header_branch
      %17 = sbr.rel (%p15) target = $region8
    $region5: #{actor_critic_forward.1} parent=1 // loop_body
      %s19 = ssub.s32 %s14, 1
      %s20 = ssub.s32 %s14, 2
      %s21 = sadd.s32 %s14, 1
      %s22 = ssub.s32 %s14, %s21
      %p23 = scmp.eq.s32.totalorder %s22, 0
      %s25 = sadd.s32 %s24, 1
      %s26 = scalar_select %p23, %s24, %s25
      %p29 = pneg %p23
      %p30 = scmp.eq.s32.totalorder %s14, 1
      %p31 = por %p29, %p30
      %p32 = scmp.ne.s32.totalorder %s24, %s27
      %p33 = scmp.eq.s32.totalorder %s14, 0
      %p34 = por %p32, %p33
      %p35 = scmp.ne.s32.totalorder %s24, %s27
      %p36 = scmp.eq.s32.totalorder %s19, 1
      %p37 = por %p35, %p36
      %p38 = scmp.ne.s32.totalorder %s27, %s28
      %p39 = scmp.eq.s32.totalorder %s19, 0
      %p40 = por %p38, %p39
      %p41 = scmp.ne.s32.totalorder %s27, %s28
      %p42 = scmp.eq.s32.totalorder %s20, 1
      %p43 = por %p41, %p42
      %p45 = scmp.ne.s32.totalorder %s28, %s44
      %p46 = scmp.eq.s32.totalorder %s20, 0
      %p47 = por %p45, %p46
      %s49 = sadd.s32 %s48, 1
      %p52 = scmp.eq.s32.totalorder %s14, 1
      %p53 = scmp.ne.s32.totalorder %s48, %s50
      %p54 = scmp.eq.s32.totalorder %s14, 0
      %p55 = por %p53, %p54
      %p56 = scmp.ne.s32.totalorder %s48, %s50
      %p57 = scmp.eq.s32.totalorder %s19, 1
      %p58 = por %p56, %p57
      %p59 = scmp.ne.s32.totalorder %s50, %s51
      %p60 = scmp.eq.s32.totalorder %s19, 0
      %p61 = por %p59, %p60
      %p62 = scmp.ne.s32.totalorder %s50, %s51
      %p63 = scmp.eq.s32.totalorder %s20, 1
      %p64 = por %p62, %p63
      %p66 = scmp.ne.s32.totalorder %s51, %s65
      %p67 = scmp.eq.s32.totalorder %s20, 0
      %p68 = por %p66, %p67
      %s70 = sadd.s32 %s69, 1
      %p73 = scmp.eq.s32.totalorder %s14, 1
      %p74 = scmp.ne.s32.totalorder %s69, %s71
      %p75 = scmp.eq.s32.totalorder %s14, 0
      %p76 = por %p74, %p75
      %p77 = scmp.ne.s32.totalorder %s69, %s71
      %p78 = scmp.eq.s32.totalorder %s19, 1
      %p79 = por %p77, %p78
      %p80 = scmp.ne.s32.totalorder %s71, %s72
      %p81 = scmp.eq.s32.totalorder %s19, 0
      %p82 = por %p80, %p81
      %p83 = scmp.ne.s32.totalorder %s71, %s72
      %p84 = scmp.eq.s32.totalorder %s20, 1
      %p85 = por %p83, %p84
      %p87 = scmp.ne.s32.totalorder %s72, %s86
      %p88 = scmp.eq.s32.totalorder %s20, 0
      %p89 = por %p87, %p88
      %s91 = sadd.s32 %s90, 1
      %p94 = scmp.eq.s32.totalorder %s14, 1
      %p95 = scmp.ne.s32.totalorder %s90, %s92
      %p96 = scmp.eq.s32.totalorder %s14, 0
      %p97 = por %p95, %p96
      %p98 = scmp.ne.s32.totalorder %s90, %s92
      %p99 = scmp.eq.s32.totalorder %s19, 1
      %p100 = por %p98, %p99
      %p101 = scmp.ne.s32.totalorder %s92, %s93
      %p102 = scmp.eq.s32.totalorder %s19, 0
      %p103 = por %p101, %p102
      %p104 = scmp.ne.s32.totalorder %s92, %s93
      %p105 = scmp.eq.s32.totalorder %s20, 1
      %p106 = por %p104, %p105
      %p108 = scmp.ne.s32.totalorder %s93, %s107
      %p109 = scmp.eq.s32.totalorder %s20, 0
      %p110 = por %p108, %p109
      %s112 = sadd.s32 %s111, 1
      %p115 = scmp.eq.s32.totalorder %s14, 1
      %p116 = scmp.ne.s32.totalorder %s111, %s113
      %p117 = scmp.eq.s32.totalorder %s14, 0
      %p118 = por %p116, %p117
      %p119 = scmp.ne.s32.totalorder %s111, %s113
      %p120 = scmp.eq.s32.totalorder %s19, 1
      %p121 = por %p119, %p120
      %p122 = scmp.ne.s32.totalorder %s113, %s114
      %p123 = scmp.eq.s32.totalorder %s19, 0
      %p124 = por %p122, %p123
      %p125 = scmp.ne.s32.totalorder %s113, %s114
      %p126 = scmp.eq.s32.totalorder %s20, 1
      %p127 = por %p125, %p126
      %p129 = scmp.ne.s32.totalorder %s114, %s128
      %p130 = scmp.eq.s32.totalorder %s20, 0
      %p131 = por %p129, %p130
      %s133 = sadd.s32 %s132, 1
      %p136 = scmp.eq.s32.totalorder %s14, 1
      %p137 = scmp.ne.s32.totalorder %s132, %s134
      %p138 = scmp.eq.s32.totalorder %s14, 0
      %p139 = por %p137, %p138
      %p140 = scmp.ne.s32.totalorder %s132, %s134
      %p141 = scmp.eq.s32.totalorder %s19, 1
      %p142 = por %p140, %p141
      %p143 = scmp.ne.s32.totalorder %s134, %s135
      %p144 = scmp.eq.s32.totalorder %s19, 0
      %p145 = por %p143, %p144
      %p146 = scmp.ne.s32.totalorder %s134, %s135
      %p147 = scmp.eq.s32.totalorder %s20, 1
      %p148 = por %p146, %p147
      %p150 = scmp.ne.s32.totalorder %s135, %s149
      %p151 = scmp.eq.s32.totalorder %s20, 0
      %p152 = por %p150, %p151
      %s153 = ssub.s32 %s14, %s21
      %p154 = scmp.eq.s32.totalorder %s153, 0
      %s156 = sadd.s32 %s155, 1
      %s157 = scalar_select %p154, %s155, %s156
      %p160 = pneg %p154
      %p161 = scmp.eq.s32.totalorder %s14, 1
      %p162 = por %p160, %p161
      %p163 = scmp.ne.s32.totalorder %s155, %s158
      %p164 = scmp.eq.s32.totalorder %s14, 0
      %p165 = por %p163, %p164
      %p166 = scmp.ne.s32.totalorder %s155, %s158
      %p167 = scmp.eq.s32.totalorder %s19, 1
      %p168 = por %p166, %p167
      %p169 = scmp.ne.s32.totalorder %s158, %s159
      %p170 = scmp.eq.s32.totalorder %s19, 0
      %p171 = por %p169, %p170
      %p172 = scmp.ne.s32.totalorder %s158, %s159
      %p173 = scmp.eq.s32.totalorder %s20, 1
      %p174 = por %p172, %p173
      %p176 = scmp.ne.s32.totalorder %s159, %s175
      %p177 = scmp.eq.s32.totalorder %s20, 0
      %p178 = por %p176, %p177
      %p179 = scmp.le.s32.totalorder 1, %s14
      %p180 = scmp.lt.s32.totalorder %s14, 3
      %p181 = pnand %p179, %p180
      %p182 = pneg %p181
      // Predicated region
      $region9: #{actor_critic_forward.1} parent=5 // pred_check
        _
      $region10: #{actor_critic_forward.1} parent=5 // pred_check_branch
        %184 = sbr.rel (%p181) target = $region12
      $region11: #{actor_critic_forward.1} parent=5 // pred_region
        %s185 = ssub.s32 %s14, 1
        // Predicated region
        $region13: #{actor_critic_forward.1} parent=11 // pred_check
          %p186 = pneg %p61
        $region14: #{actor_critic_forward.1} parent=11 // pred_check_branch
          %188 = sbr.rel (%p186) target = $region16
        $region15: #{actor_critic_forward.1} parent=11 // pred_region
          _
        $region16: #{actor_critic_forward.1} parent=11 // pred_fallthru
          _
        // Predicated region
        $region17: #{actor_critic_forward.1} parent=11 // pred_check
          %p189 = pneg %p82
        $region18: #{actor_critic_forward.1} parent=11 // pred_check_branch
          %191 = sbr.rel (%p189) target = $region20
        $region19: #{actor_critic_forward.1} parent=11 // pred_region
          %s193 = ssub.s32 12288, 12288
          %194 = vsyncadd [#allocation3], %s193
          %s195 = sshll.u32 [#allocation2], 4
          %s196 = int_to_ptr.vmem [resolvable:$true] %s195
          %201 = dma.hbm_to_vmem [thread:$0]  %s2, 12288, %s196, [#allocation3], 128, 128, 8
        $region20: #{actor_critic_forward.1} parent=11 // pred_fallthru
          _
        // Predicated region
        $region21: #{actor_critic_forward.1} parent=11 // pred_check
          %p202 = pneg %p103
        $region22: #{actor_critic_forward.1} parent=11 // pred_check_branch
          %204 = sbr.rel (%p202) target = $region24
        $region23: #{actor_critic_forward.1} parent=11 // pred_region
          %s206 = ssub.s32 2048, 2048
          %207 = vsyncadd [#allocation5], %s206
          %s208 = sshll.u32 [#allocation4], 4
          %s209 = int_to_ptr.vmem [resolvable:$true] %s208
          %214 = dma.hbm_to_vmem [thread:$0]  %s3, 2048, %s209, [#allocation5], 64, 64, 4
        $region24: #{actor_critic_forward.1} parent=11 // pred_fallthru
          _
        // Predicated region
        $region25: #{actor_critic_forward.1} parent=11 // pred_check
          %p215 = pneg %p124
        $region26: #{actor_critic_forward.1} parent=11 // pred_check_branch
          %217 = sbr.rel (%p215) target = $region28
        $region27: #{actor_critic_forward.1} parent=11 // pred_region
          _
        $region28: #{actor_critic_forward.1} parent=11 // pred_fallthru
          _
        // Predicated region
        $region29: #{actor_critic_forward.1} parent=11 // pred_check
          %p218 = pneg %p145
        $region30: #{actor_critic_forward.1} parent=11 // pred_check_branch
          %220 = sbr.rel (%p218) target = $region32
        $region31: #{actor_critic_forward.1} parent=11 // pred_region
          _
        $region32: #{actor_critic_forward.1} parent=11 // pred_fallthru
          _
      $region12: #{actor_critic_forward.1} parent=5 // pred_fallthru
        _
      %p221 = scmp.lt.s32.totalorder %s14, 2
      // Predicated region
      $region33: #{actor_critic_forward.1} parent=5 // pred_check
        %p222 = pneg %p221
      $region34: #{actor_critic_forward.1} parent=5 // pred_check_branch
        %224 = sbr.rel (%p222) target = $region36
      $region35: #{actor_critic_forward.1} parent=5 // pred_region
        // Predicated region
        $region37: #{actor_critic_forward.1} parent=35 // pred_check
          %p225 = pneg %p34
        $region38: #{actor_critic_forward.1} parent=35 // pred_check_branch
          %227 = sbr.rel (%p225) target = $region40
        $region39: #{actor_critic_forward.1} parent=35 // pred_region
          %p228 = scmp.lt.s32.totalorder %s14, 1
          %s229 = scalar_select %p228, %s14, 1
          %s230 = smul.addr %s229, 8
          %s231 = scalar_lea.vmem %s0, %s230
        $region40: #{actor_critic_forward.1} parent=35 // pred_fallthru
          _
      $region36: #{actor_critic_forward.1} parent=5 // pred_fallthru
        _
      %p232 = scmp.le.s32.totalorder 1, %s14
      %p233 = scmp.lt.s32.totalorder %s14, 3
      %p234 = pnand %p232, %p233
      %p235 = pneg %p234
      // Predicated region
      $region41: #{actor_critic_forward.1} parent=5 // pred_check
        _
      $region42: #{actor_critic_forward.1} parent=5 // pred_check_branch
        %237 = sbr.rel (%p234) target = $region44
      $region43: #{actor_critic_forward.1} parent=5 // pred_region
        %s238 = ssub.s32 %s14, 1
        // Predicated region
        $region45: #{actor_critic_forward.1} parent=43 // pred_check
          %p239 = pneg %p82
        $region46: #{actor_critic_forward.1} parent=43 // pred_check_branch
          %241 = sbr.rel (%p239) target = $region48
        $region47: #{actor_critic_forward.1} parent=43 // pred_region
          %242 = dma.done [#allocation3], 12288
        $region48: #{actor_critic_forward.1} parent=43 // pred_fallthru
          _
        // Predicated region
        $region49: #{actor_critic_forward.1} parent=43 // pred_check
          %p243 = pneg %p103
        $region50: #{actor_critic_forward.1} parent=43 // pred_check_branch
          %245 = sbr.rel (%p243) target = $region52
        $region51: #{actor_critic_forward.1} parent=43 // pred_region
          %246 = dma.done [#allocation5], 2048
        $region52: #{actor_critic_forward.1} parent=43 // pred_fallthru
          _
        %p247 = scmp.lt.s32.totalorder %s19, 1
        %s248 = scalar_select %p247, %s19, 1
        %s249 = smul.addr %s248, 8
        %s250 = scalar_lea.vmem %s0, %s249
        %p251 = pneg %p40
        %p252 = pneg %p37
        %p253 = pneg %p61
        %p254 = pneg %p58
        %p255 = pneg %p82
        %p256 = pneg %p79
        %p257 = pneg %p103
        %p258 = pneg %p100
        %p259 = pneg %p124
        %p260 = pneg %p121
        %p261 = pneg %p145
        %p262 = pneg %p142
        %p263 = pneg %p171
        %p264 = pneg %p168
        %p265 = scmp.lt.s32.totalorder %s19, 1
        %s266 = scalar_select %p265, %s19, 1
        %s267 = smul.addr %s266, 4
        %s268 = scalar_lea.vmem %s6, %s267
        %p269 = scmp.lt.s32.totalorder %s19, 1
        %s270 = scalar_select %p269, %s19, 1
        %s271 = smul.addr %s270, 8
        %s272 = scalar_lea.vmem %s0, %s271
        %p273 = scmp.lt.s32.totalorder %s19, 1
        %s274 = scalar_select %p273, %s19, 1
        %s275 = smul.addr %s274, 4
        %s276 = scalar_lea.vmem %s6, %s275
        %v278 = vld [vmem:[%s272] sm:$0xff]
        %v279 = vpack.c.bf16 %v278, %v278
        %v280 = vld [vmem:[%s1] sm:$0xff]
        %v281 = vld [vmem:[%s1 + $0x8] sm:$0xff]
        %v282 = vld [vmem:[%s4] sm:$0x3]
        %v284 = vlaneseq
        %v285 = vshrl.u32 %v284, 7
        %v286 = vsub.s32 0, %v285
        %v287 = vrot.slane %v282, %v286
        %v288 = vlaneseq
        %v289 = vshrl.u32 %v288, 7
        %v290 = vsub.s32 1, %v289
        %v291 = vrot.slane %v282, %v290
        %v296 = vunpack.c.l.b16 %v280
        %v297 = vunpack.c.h.b16 %v280
        %v298 = vunpack.c.l.b16 %v281
        %v299 = vunpack.c.h.b16 %v281
        %v300 = vpack.c.b16 %v298, %v296
        %v301 = vpack.c.b16 %v299, %v297
        %vm304 = vcmask 130048
        %v306 = vsel %vm304, %v279, 0
        %308 = vmatprep.subr.bf16.mxu0 %v301
        %309 = vmatpush1.bf16.msra.mxu0 %v300
        %310 = vmatprep.subr.bf16.mxu0 0
        %311 = vmatpush1.bf16.msra.mxu0 0
        %312 = vmatprep.subr.bf16.mxu0 0
        %313 = vmatpush1.bf16.msra.mxu0 0
        %314 = vmatprep.subr.bf16.mxu0 0
        %315 = vmatpush1.bf16.msra.mxu0 0
        %316 = vmatprep.subr.bf16.mxu0 0
        %317 = vmatpush1.bf16.msra.mxu0 0
        %318 = vmatprep.subr.bf16.mxu0 0
        %319 = vmatpush1.bf16.msra.mxu0 0
        %320 = vmatprep.subr.bf16.mxu0 0
        %321 = vmatpush1.bf16.msra.mxu0 0
        %322 = vmatprep.subr.bf16.mxu0 0
        %323 = vmatpush1.bf16.msra.mxu0 0
        %324 = vmatprep.subr.bf16.mxu0 0
        %325 = vmatpush1.bf16.msra.mxu0 0
        %326 = vmatprep.subr.bf16.mxu0 0
        %327 = vmatpush1.bf16.msra.mxu0 0
        %328 = vmatprep.subr.bf16.mxu0 0
        %329 = vmatpush1.bf16.msra.mxu0 0
        %330 = vmatprep.subr.bf16.mxu0 0
        %331 = vmatpush1.bf16.msra.mxu0 0
        %332 = vmatprep.subr.bf16.mxu0 0
        %333 = vmatpush1.bf16.msra.mxu0 0
        %334 = vmatprep.subr.bf16.mxu0 0
        %335 = vmatpush1.bf16.msra.mxu0 0
        %336 = vmatprep.subr.bf16.mxu0 0
        %337 = vmatpush1.bf16.msra.mxu0 0
        %338 = vmatprep.subr.bf16.mxu0 0
        %339 = vmatpush1.bf16.msra.mxu0 0
        %340 = vmatprep.mubr.bf16.mxu0 0
        %341 = vmatmul.mubr.bf16.gmra.mrb[0].mxu0 %v306
        %v342 = vpop.f32.mrb[0].mxu0
        %v343 = vadd.f32 %v287, %v342
        %v344 = vpop.f32.mrb[0].mxu0
        %v345 = vadd.f32 %v291, %v344
        %v346 = vpop.f32.mrb[0].mxu0
        %v347 = vpop.f32.mrb[0].mxu0
        %348 = vdwg.mxu0
        %v349 = vmax.f32 %v343, 0.0
        %v350 = vmax.f32 %v345, 0.0
        %v351 = vpack.c.bf16 %v349, %v349
        %v352 = vpack.c.bf16 %v350, %v350
        %v353 = vld [vmem:[#allocation2] sm:$0xff]
        %v354 = vld [vmem:[#allocation2 + $0x8] sm:$0xff]
        %v355 = vld [vmem:[#allocation2 + $0x10] sm:$0xff]
        %v356 = vld [vmem:[#allocation2 + $0x18] sm:$0xff]
        %v357 = vld [vmem:[#allocation2 + $0x20] sm:$0xff]
        %v358 = vld [vmem:[#allocation2 + $0x28] sm:$0xff]
        %v359 = vld [vmem:[#allocation2 + $0x30] sm:$0xff]
        %v360 = vld [vmem:[#allocation2 + $0x38] sm:$0xff]
        %v361 = vld [vmem:[#allocation2 + $0x40] sm:$0xff]
        %v362 = vld [vmem:[#allocation2 + $0x48] sm:$0xff]
        %v363 = vld [vmem:[#allocation2 + $0x50] sm:$0xff]
        %v364 = vld [vmem:[#allocation2 + $0x58] sm:$0xff]
        %v365 = vld [vmem:[#allocation2 + $0x60] sm:$0xff]
        %v366 = vld [vmem:[#allocation2 + $0x68] sm:$0xff]
        %v367 = vld [vmem:[#allocation2 + $0x70] sm:$0xff]
        %v368 = vld [vmem:[#allocation2 + $0x78] sm:$0xff]
        %v369 = vld [vmem:[#allocation2 + $0x80] sm:$0xff]
        %v370 = vld [vmem:[#allocation2 + $0x88] sm:$0xff]
        %v371 = vld [vmem:[#allocation2 + $0x90] sm:$0xff]
        %v372 = vld [vmem:[#allocation2 + $0x98] sm:$0xff]
        %v373 = vld [vmem:[#allocation2 + $0xa0] sm:$0xff]
        %v374 = vld [vmem:[#allocation2 + $0xa8] sm:$0xff]
        %v375 = vld [vmem:[#allocation2 + $0xb0] sm:$0xff]
        %v376 = vld [vmem:[#allocation2 + $0xb8] sm:$0xff]
        %v377 = vld [vmem:[#allocation2 + $0xc0] sm:$0xff]
        %v378 = vld [vmem:[#allocation2 + $0xc8] sm:$0xff]
        %v379 = vld [vmem:[#allocation2 + $0xd0] sm:$0xff]
        %v380 = vld [vmem:[#allocation2 + $0xd8] sm:$0xff]
        %v381 = vld [vmem:[#allocation2 + $0xe0] sm:$0xff]
        %v382 = vld [vmem:[#allocation2 + $0xe8] sm:$0xff]
        %v383 = vld [vmem:[#allocation2 + $0xf0] sm:$0xff]
        %v384 = vld [vmem:[#allocation2 + $0xf8] sm:$0xff]
        %s385 = scalar_lea.vmem %s4, 2
        %v386 = vld [vmem:[%s385] sm:$0x3]
        %v388 = vlaneseq
        %v389 = vshrl.u32 %v388, 7
        %v390 = vsub.s32 0, %v389
        %v391 = vrot.slane %v386, %v390
        %v392 = vlaneseq
        %v393 = vshrl.u32 %v392, 7
        %v394 = vsub.s32 1, %v393
        %v395 = vrot.slane %v386, %v394
        %v430 = vunpack.c.l.b16 %v353
        %v431 = vunpack.c.h.b16 %v353
        %v432 = vunpack.c.l.b16 %v354
        %v433 = vunpack.c.h.b16 %v354
        %v434 = vunpack.c.l.b16 %v355
        %v435 = vunpack.c.h.b16 %v355
        %v436 = vunpack.c.l.b16 %v356
        %v437 = vunpack.c.h.b16 %v356
        %v438 = vunpack.c.l.b16 %v357
        %v439 = vunpack.c.h.b16 %v357
        %v440 = vunpack.c.l.b16 %v358
        %v441 = vunpack.c.h.b16 %v358
        %v442 = vunpack.c.l.b16 %v359
        %v443 = vunpack.c.h.b16 %v359
        %v444 = vunpack.c.l.b16 %v360
        %v445 = vunpack.c.h.b16 %v360
        %v446 = vunpack.c.l.b16 %v361
        %v447 = vunpack.c.h.b16 %v361
        %v448 = vunpack.c.l.b16 %v362
        %v449 = vunpack.c.h.b16 %v362
        %v450 = vunpack.c.l.b16 %v363
        %v451 = vunpack.c.h.b16 %v363
        %v452 = vunpack.c.l.b16 %v364
        %v453 = vunpack.c.h.b16 %v364
        %v454 = vunpack.c.l.b16 %v365
        %v455 = vunpack.c.h.b16 %v365
        %v456 = vunpack.c.l.b16 %v366
        %v457 = vunpack.c.h.b16 %v366
        %v458 = vunpack.c.l.b16 %v367
        %v459 = vunpack.c.h.b16 %v367
        %v460 = vunpack.c.l.b16 %v368
        %v461 = vunpack.c.h.b16 %v368
        %v462 = vunpack.c.l.b16 %v369
        %v463 = vunpack.c.h.b16 %v369
        %v464 = vunpack.c.l.b16 %v370
        %v465 = vunpack.c.h.b16 %v370
        %v466 = vunpack.c.l.b16 %v371
        %v467 = vunpack.c.h.b16 %v371
        %v468 = vunpack.c.l.b16 %v372
        %v469 = vunpack.c.h.b16 %v372
        %v470 = vunpack.c.l.b16 %v373
        %v471 = vunpack.c.h.b16 %v373
        %v472 = vunpack.c.l.b16 %v374
        %v473 = vunpack.c.h.b16 %v374
        %v474 = vunpack.c.l.b16 %v375
        %v475 = vunpack.c.h.b16 %v375
        %v476 = vunpack.c.l.b16 %v376
        %v477 = vunpack.c.h.b16 %v376
        %v478 = vunpack.c.l.b16 %v377
        %v479 = vunpack.c.h.b16 %v377
        %v480 = vunpack.c.l.b16 %v378
        %v481 = vunpack.c.h.b16 %v378
        %v482 = vunpack.c.l.b16 %v379
        %v483 = vunpack.c.h.b16 %v379
        %v484 = vunpack.c.l.b16 %v380
        %v485 = vunpack.c.h.b16 %v380
        %v486 = vunpack.c.l.b16 %v381
        %v487 = vunpack.c.h.b16 %v381
        %v488 = vunpack.c.l.b16 %v382
        %v489 = vunpack.c.h.b16 %v382
        %v490 = vunpack.c.l.b16 %v383
        %v491 = vunpack.c.h.b16 %v383
        %v492 = vunpack.c.l.b16 %v384
        %v493 = vunpack.c.h.b16 %v384
        %v494 = vpack.c.b16 %v432, %v430
        %v495 = vpack.c.b16 %v433, %v431
        %v496 = vpack.c.b16 %v436, %v434
        %v497 = vpack.c.b16 %v437, %v435
        %v498 = vpack.c.b16 %v440, %v438
        %v499 = vpack.c.b16 %v441, %v439
        %v500 = vpack.c.b16 %v444, %v442
        %v501 = vpack.c.b16 %v445, %v443
        %v502 = vpack.c.b16 %v448, %v446
        %v503 = vpack.c.b16 %v449, %v447
        %v504 = vpack.c.b16 %v452, %v450
        %v505 = vpack.c.b16 %v453, %v451
        %v506 = vpack.c.b16 %v456, %v454
        %v507 = vpack.c.b16 %v457, %v455
        %v508 = vpack.c.b16 %v460, %v458
        %v509 = vpack.c.b16 %v461, %v459
        %v510 = vpack.c.b16 %v464, %v462
        %v511 = vpack.c.b16 %v465, %v463
        %v512 = vpack.c.b16 %v468, %v466
        %v513 = vpack.c.b16 %v469, %v467
        %v514 = vpack.c.b16 %v472, %v470
        %v515 = vpack.c.b16 %v473, %v471
        %v516 = vpack.c.b16 %v476, %v474
        %v517 = vpack.c.b16 %v477, %v475
        %v518 = vpack.c.b16 %v480, %v478
        %v519 = vpack.c.b16 %v481, %v479
        %v520 = vpack.c.b16 %v484, %v482
        %v521 = vpack.c.b16 %v485, %v483
        %v522 = vpack.c.b16 %v488, %v486
        %v523 = vpack.c.b16 %v489, %v487
        %v524 = vpack.c.b16 %v492, %v490
        %v525 = vpack.c.b16 %v493, %v491
        %558 = vmatprep.subr.bf16.mxu0 %v495
        %559 = vmatpush1.bf16.msra.mxu0 %v494
        %560 = vmatprep.subr.bf16.mxu0 %v497
        %561 = vmatpush1.bf16.msra.mxu0 %v496
        %562 = vmatprep.subr.bf16.mxu0 %v499
        %563 = vmatpush1.bf16.msra.mxu0 %v498
        %564 = vmatprep.subr.bf16.mxu0 %v501
        %565 = vmatpush1.bf16.msra.mxu0 %v500
        %566 = vmatprep.subr.bf16.mxu0 %v503
        %567 = vmatpush1.bf16.msra.mxu0 %v502
        %568 = vmatprep.subr.bf16.mxu0 %v505
        %569 = vmatpush1.bf16.msra.mxu0 %v504
        %570 = vmatprep.subr.bf16.mxu0 %v507
        %571 = vmatpush1.bf16.msra.mxu0 %v506
        %572 = vmatprep.subr.bf16.mxu0 %v509
        %573 = vmatpush1.bf16.msra.mxu0 %v508
        %574 = vmatprep.subr.bf16.mxu0 %v511
        %575 = vmatpush1.bf16.msra.mxu0 %v510
        %576 = vmatprep.subr.bf16.mxu0 %v513
        %577 = vmatpush1.bf16.msra.mxu0 %v512
        %578 = vmatprep.subr.bf16.mxu0 %v515
        %579 = vmatpush1.bf16.msra.mxu0 %v514
        %580 = vmatprep.subr.bf16.mxu0 %v517
        %581 = vmatpush1.bf16.msra.mxu0 %v516
        %582 = vmatprep.subr.bf16.mxu0 %v519
        %583 = vmatpush1.bf16.msra.mxu0 %v518
        %584 = vmatprep.subr.bf16.mxu0 %v521
        %585 = vmatpush1.bf16.msra.mxu0 %v520
        %586 = vmatprep.subr.bf16.mxu0 %v523
        %587 = vmatpush1.bf16.msra.mxu0 %v522
        %588 = vmatprep.subr.bf16.mxu0 %v525
        %589 = vmatpush1.bf16.msra.mxu0 %v524
        %590 = vmatprep.mubr.bf16.mxu0 %v352
        %591 = vmatmul.mubr.bf16.gmra.mrb[0].mxu0 %v351
        %v592 = vpop.f32.mrb[0].mxu0
        %v593 = vadd.f32 %v391, %v592
        %v594 = vpop.f32.mrb[0].mxu0
        %v595 = vadd.f32 %v395, %v594
        %v596 = vpop.f32.mrb[0].mxu0
        %v597 = vpop.f32.mrb[0].mxu0
        %598 = vdwg.mxu0
        %v599 = vmax.f32 %v593, 0.0
        %v600 = vmax.f32 %v595, 0.0
        %v601 = vpack.c.bf16 %v599, %v599
        %v602 = vpack.c.bf16 %v600, %v600
        %s603 = scalar_lea.vmem [#allocation2], 256
        %v604 = vld [vmem:[%s603] sm:$0xff]
        %v605 = vld [vmem:[%s603 + $0x8] sm:$0xff]
        %v606 = vld [vmem:[%s603 + $0x10] sm:$0xff]
        %v607 = vld [vmem:[%s603 + $0x18] sm:$0xff]
        %v608 = vld [vmem:[%s603 + $0x20] sm:$0xff]
        %v609 = vld [vmem:[%s603 + $0x28] sm:$0xff]
        %v610 = vld [vmem:[%s603 + $0x30] sm:$0xff]
        %v611 = vld [vmem:[%s603 + $0x38] sm:$0xff]
        %v612 = vld [vmem:[%s603 + $0x40] sm:$0xff]
        %v613 = vld [vmem:[%s603 + $0x48] sm:$0xff]
        %v614 = vld [vmem:[%s603 + $0x50] sm:$0xff]
        %v615 = vld [vmem:[%s603 + $0x58] sm:$0xff]
        %v616 = vld [vmem:[%s603 + $0x60] sm:$0xff]
        %v617 = vld [vmem:[%s603 + $0x68] sm:$0xff]
        %v618 = vld [vmem:[%s603 + $0x70] sm:$0xff]
        %v619 = vld [vmem:[%s603 + $0x78] sm:$0xff]
        %v620 = vld [vmem:[%s603 + $0x80] sm:$0xff]
        %v621 = vld [vmem:[%s603 + $0x88] sm:$0xff]
        %v622 = vld [vmem:[%s603 + $0x90] sm:$0xff]
        %v623 = vld [vmem:[%s603 + $0x98] sm:$0xff]
        %v624 = vld [vmem:[%s603 + $0xa0] sm:$0xff]
        %v625 = vld [vmem:[%s603 + $0xa8] sm:$0xff]
        %v626 = vld [vmem:[%s603 + $0xb0] sm:$0xff]
        %v627 = vld [vmem:[%s603 + $0xb8] sm:$0xff]
        %v628 = vld [vmem:[%s603 + $0xc0] sm:$0xff]
        %v629 = vld [vmem:[%s603 + $0xc8] sm:$0xff]
        %v630 = vld [vmem:[%s603 + $0xd0] sm:$0xff]
        %v631 = vld [vmem:[%s603 + $0xd8] sm:$0xff]
        %v632 = vld [vmem:[%s603 + $0xe0] sm:$0xff]
        %v633 = vld [vmem:[%s603 + $0xe8] sm:$0xff]
        %v634 = vld [vmem:[%s603 + $0xf0] sm:$0xff]
        %v635 = vld [vmem:[%s603 + $0xf8] sm:$0xff]
        %s636 = scalar_lea.vmem %s4, 4
        %v637 = vld [vmem:[%s636] sm:$0x3]
        %v639 = vlaneseq
        %v640 = vshrl.u32 %v639, 7
        %v641 = vsub.s32 0, %v640
        %v642 = vrot.slane %v637, %v641
        %v643 = vlaneseq
        %v644 = vshrl.u32 %v643, 7
        %v645 = vsub.s32 1, %v644
        %v646 = vrot.slane %v637, %v645
        %v681 = vunpack.c.l.b16 %v604
        %v682 = vunpack.c.h.b16 %v604
        %v683 = vunpack.c.l.b16 %v605
        %v684 = vunpack.c.h.b16 %v605
        %v685 = vunpack.c.l.b16 %v606
        %v686 = vunpack.c.h.b16 %v606
        %v687 = vunpack.c.l.b16 %v607
        %v688 = vunpack.c.h.b16 %v607
        %v689 = vunpack.c.l.b16 %v608
        %v690 = vunpack.c.h.b16 %v608
        %v691 = vunpack.c.l.b16 %v609
        %v692 = vunpack.c.h.b16 %v609
        %v693 = vunpack.c.l.b16 %v610
        %v694 = vunpack.c.h.b16 %v610
        %v695 = vunpack.c.l.b16 %v611
        %v696 = vunpack.c.h.b16 %v611
        %v697 = vunpack.c.l.b16 %v612
        %v698 = vunpack.c.h.b16 %v612
        %v699 = vunpack.c.l.b16 %v613
        %v700 = vunpack.c.h.b16 %v613
        %v701 = vunpack.c.l.b16 %v614
        %v702 = vunpack.c.h.b16 %v614
        %v703 = vunpack.c.l.b16 %v615
        %v704 = vunpack.c.h.b16 %v615
        %v705 = vunpack.c.l.b16 %v616
        %v706 = vunpack.c.h.b16 %v616
        %v707 = vunpack.c.l.b16 %v617
        %v708 = vunpack.c.h.b16 %v617
        %v709 = vunpack.c.l.b16 %v618
        %v710 = vunpack.c.h.b16 %v618
        %v711 = vunpack.c.l.b16 %v619
        %v712 = vunpack.c.h.b16 %v619
        %v713 = vunpack.c.l.b16 %v620
        %v714 = vunpack.c.h.b16 %v620
        %v715 = vunpack.c.l.b16 %v621
        %v716 = vunpack.c.h.b16 %v621
        %v717 = vunpack.c.l.b16 %v622
        %v718 = vunpack.c.h.b16 %v622
        %v719 = vunpack.c.l.b16 %v623
        %v720 = vunpack.c.h.b16 %v623
        %v721 = vunpack.c.l.b16 %v624
        %v722 = vunpack.c.h.b16 %v624
        %v723 = vunpack.c.l.b16 %v625
        %v724 = vunpack.c.h.b16 %v625
        %v725 = vunpack.c.l.b16 %v626
        %v726 = vunpack.c.h.b16 %v626
        %v727 = vunpack.c.l.b16 %v627
        %v728 = vunpack.c.h.b16 %v627
        %v729 = vunpack.c.l.b16 %v628
        %v730 = vunpack.c.h.b16 %v628
        %v731 = vunpack.c.l.b16 %v629
        %v732 = vunpack.c.h.b16 %v629
        %v733 = vunpack.c.l.b16 %v630
        %v734 = vunpack.c.h.b16 %v630
        %v735 = vunpack.c.l.b16 %v631
        %v736 = vunpack.c.h.b16 %v631
        %v737 = vunpack.c.l.b16 %v632
        %v738 = vunpack.c.h.b16 %v632
        %v739 = vunpack.c.l.b16 %v633
        %v740 = vunpack.c.h.b16 %v633
        %v741 = vunpack.c.l.b16 %v634
        %v742 = vunpack.c.h.b16 %v634
        %v743 = vunpack.c.l.b16 %v635
        %v744 = vunpack.c.h.b16 %v635
        %v745 = vpack.c.b16 %v683, %v681
        %v746 = vpack.c.b16 %v684, %v682
        %v747 = vpack.c.b16 %v687, %v685
        %v748 = vpack.c.b16 %v688, %v686
        %v749 = vpack.c.b16 %v691, %v689
        %v750 = vpack.c.b16 %v692, %v690
        %v751 = vpack.c.b16 %v695, %v693
        %v752 = vpack.c.b16 %v696, %v694
        %v753 = vpack.c.b16 %v699, %v697
        %v754 = vpack.c.b16 %v700, %v698
        %v755 = vpack.c.b16 %v703, %v701
        %v756 = vpack.c.b16 %v704, %v702
        %v757 = vpack.c.b16 %v707, %v705
        %v758 = vpack.c.b16 %v708, %v706
        %v759 = vpack.c.b16 %v711, %v709
        %v760 = vpack.c.b16 %v712, %v710
        %v761 = vpack.c.b16 %v715, %v713
        %v762 = vpack.c.b16 %v716, %v714
        %v763 = vpack.c.b16 %v719, %v717
        %v764 = vpack.c.b16 %v720, %v718
        %v765 = vpack.c.b16 %v723, %v721
        %v766 = vpack.c.b16 %v724, %v722
        %v767 = vpack.c.b16 %v727, %v725
        %v768 = vpack.c.b16 %v728, %v726
        %v769 = vpack.c.b16 %v731, %v729
        %v770 = vpack.c.b16 %v732, %v730
        %v771 = vpack.c.b16 %v735, %v733
        %v772 = vpack.c.b16 %v736, %v734
        %v773 = vpack.c.b16 %v739, %v737
        %v774 = vpack.c.b16 %v740, %v738
        %v775 = vpack.c.b16 %v743, %v741
        %v776 = vpack.c.b16 %v744, %v742
        %809 = vmatprep.subr.bf16.mxu0 %v746
        %810 = vmatpush1.bf16.msra.mxu0 %v745
        %811 = vmatprep.subr.bf16.mxu0 %v748
        %812 = vmatpush1.bf16.msra.mxu0 %v747
        %813 = vmatprep.subr.bf16.mxu0 %v750
        %814 = vmatpush1.bf16.msra.mxu0 %v749
        %815 = vmatprep.subr.bf16.mxu0 %v752
        %816 = vmatpush1.bf16.msra.mxu0 %v751
        %817 = vmatprep.subr.bf16.mxu0 %v754
        %818 = vmatpush1.bf16.msra.mxu0 %v753
        %819 = vmatprep.subr.bf16.mxu0 %v756
        %820 = vmatpush1.bf16.msra.mxu0 %v755
        %821 = vmatprep.subr.bf16.mxu0 %v758
        %822 = vmatpush1.bf16.msra.mxu0 %v757
        %823 = vmatprep.subr.bf16.mxu0 %v760
        %824 = vmatpush1.bf16.msra.mxu0 %v759
        %825 = vmatprep.subr.bf16.mxu0 %v762
        %826 = vmatpush1.bf16.msra.mxu0 %v761
        %827 = vmatprep.subr.bf16.mxu0 %v764
        %828 = vmatpush1.bf16.msra.mxu0 %v763
        %829 = vmatprep.subr.bf16.mxu0 %v766
        %830 = vmatpush1.bf16.msra.mxu0 %v765
        %831 = vmatprep.subr.bf16.mxu0 %v768
        %832 = vmatpush1.bf16.msra.mxu0 %v767
        %833 = vmatprep.subr.bf16.mxu0 %v770
        %834 = vmatpush1.bf16.msra.mxu0 %v769
        %835 = vmatprep.subr.bf16.mxu0 %v772
        %836 = vmatpush1.bf16.msra.mxu0 %v771
        %837 = vmatprep.subr.bf16.mxu0 %v774
        %838 = vmatpush1.bf16.msra.mxu0 %v773
        %839 = vmatprep.subr.bf16.mxu0 %v776
        %840 = vmatpush1.bf16.msra.mxu0 %v775
        %841 = vmatprep.mubr.bf16.mxu0 %v602
        %842 = vmatmul.mubr.bf16.gmra.mrb[0].mxu0 %v601
        %v843 = vpop.f32.mrb[0].mxu0
        %v844 = vadd.f32 %v642, %v843
        %v845 = vpop.f32.mrb[0].mxu0
        %v846 = vadd.f32 %v646, %v845
        %v847 = vpop.f32.mrb[0].mxu0
        %v848 = vpop.f32.mrb[0].mxu0
        %849 = vdwg.mxu0
        %v850 = vmax.f32 %v844, 0.0
        %v851 = vmax.f32 %v846, 0.0
        %v852 = vpack.c.bf16 %v850, %v850
        %v853 = vpack.c.bf16 %v851, %v851
        %s854 = scalar_lea.vmem [#allocation2], 512
        %v855 = vld [vmem:[%s854] sm:$0xff]
        %v856 = vld [vmem:[%s854 + $0x8] sm:$0xff]
        %v857 = vld [vmem:[%s854 + $0x10] sm:$0xff]
        %v858 = vld [vmem:[%s854 + $0x18] sm:$0xff]
        %v859 = vld [vmem:[%s854 + $0x20] sm:$0xff]
        %v860 = vld [vmem:[%s854 + $0x28] sm:$0xff]
        %v861 = vld [vmem:[%s854 + $0x30] sm:$0xff]
        %v862 = vld [vmem:[%s854 + $0x38] sm:$0xff]
        %v863 = vld [vmem:[%s854 + $0x40] sm:$0xff]
        %v864 = vld [vmem:[%s854 + $0x48] sm:$0xff]
        %v865 = vld [vmem:[%s854 + $0x50] sm:$0xff]
        %v866 = vld [vmem:[%s854 + $0x58] sm:$0xff]
        %v867 = vld [vmem:[%s854 + $0x60] sm:$0xff]
        %v868 = vld [vmem:[%s854 + $0x68] sm:$0xff]
        %v869 = vld [vmem:[%s854 + $0x70] sm:$0xff]
        %v870 = vld [vmem:[%s854 + $0x78] sm:$0xff]
        %v871 = vld [vmem:[%s854 + $0x80] sm:$0xff]
        %v872 = vld [vmem:[%s854 + $0x88] sm:$0xff]
        %v873 = vld [vmem:[%s854 + $0x90] sm:$0xff]
        %v874 = vld [vmem:[%s854 + $0x98] sm:$0xff]
        %v875 = vld [vmem:[%s854 + $0xa0] sm:$0xff]
        %v876 = vld [vmem:[%s854 + $0xa8] sm:$0xff]
        %v877 = vld [vmem:[%s854 + $0xb0] sm:$0xff]
        %v878 = vld [vmem:[%s854 + $0xb8] sm:$0xff]
        %v879 = vld [vmem:[%s854 + $0xc0] sm:$0xff]
        %v880 = vld [vmem:[%s854 + $0xc8] sm:$0xff]
        %v881 = vld [vmem:[%s854 + $0xd0] sm:$0xff]
        %v882 = vld [vmem:[%s854 + $0xd8] sm:$0xff]
        %v883 = vld [vmem:[%s854 + $0xe0] sm:$0xff]
        %v884 = vld [vmem:[%s854 + $0xe8] sm:$0xff]
        %v885 = vld [vmem:[%s854 + $0xf0] sm:$0xff]
        %v886 = vld [vmem:[%s854 + $0xf8] sm:$0xff]
        %s887 = scalar_lea.vmem %s4, 6
        %v888 = vld [vmem:[%s887] sm:$0x3]
        %v890 = vlaneseq
        %v891 = vshrl.u32 %v890, 7
        %v892 = vsub.s32 0, %v891
        %v893 = vrot.slane %v888, %v892
        %v894 = vlaneseq
        %v895 = vshrl.u32 %v894, 7
        %v896 = vsub.s32 1, %v895
        %v897 = vrot.slane %v888, %v896
        %v932 = vunpack.c.l.b16 %v855
        %v933 = vunpack.c.h.b16 %v855
        %v934 = vunpack.c.l.b16 %v856
        %v935 = vunpack.c.h.b16 %v856
        %v936 = vunpack.c.l.b16 %v857
        %v937 = vunpack.c.h.b16 %v857
        %v938 = vunpack.c.l.b16 %v858
        %v939 = vunpack.c.h.b16 %v858
        %v940 = vunpack.c.l.b16 %v859
        %v941 = vunpack.c.h.b16 %v859
        %v942 = vunpack.c.l.b16 %v860
        %v943 = vunpack.c.h.b16 %v860
        %v944 = vunpack.c.l.b16 %v861
        %v945 = vunpack.c.h.b16 %v861
        %v946 = vunpack.c.l.b16 %v862
        %v947 = vunpack.c.h.b16 %v862
        %v948 = vunpack.c.l.b16 %v863
        %v949 = vunpack.c.h.b16 %v863
        %v950 = vunpack.c.l.b16 %v864
        %v951 = vunpack.c.h.b16 %v864
        %v952 = vunpack.c.l.b16 %v865
        %v953 = vunpack.c.h.b16 %v865
        %v954 = vunpack.c.l.b16 %v866
        %v955 = vunpack.c.h.b16 %v866
        %v956 = vunpack.c.l.b16 %v867
        %v957 = vunpack.c.h.b16 %v867
        %v958 = vunpack.c.l.b16 %v868
        %v959 = vunpack.c.h.b16 %v868
        %v960 = vunpack.c.l.b16 %v869
        %v961 = vunpack.c.h.b16 %v869
        %v962 = vunpack.c.l.b16 %v870
        %v963 = vunpack.c.h.b16 %v870
        %v964 = vunpack.c.l.b16 %v871
        %v965 = vunpack.c.h.b16 %v871
        %v966 = vunpack.c.l.b16 %v872
        %v967 = vunpack.c.h.b16 %v872
        %v968 = vunpack.c.l.b16 %v873
        %v969 = vunpack.c.h.b16 %v873
        %v970 = vunpack.c.l.b16 %v874
        %v971 = vunpack.c.h.b16 %v874
        %v972 = vunpack.c.l.b16 %v875
        %v973 = vunpack.c.h.b16 %v875
        %v974 = vunpack.c.l.b16 %v876
        %v975 = vunpack.c.h.b16 %v876
        %v976 = vunpack.c.l.b16 %v877
        %v977 = vunpack.c.h.b16 %v877
        %v978 = vunpack.c.l.b16 %v878
        %v979 = vunpack.c.h.b16 %v878
        %v980 = vunpack.c.l.b16 %v879
        %v981 = vunpack.c.h.b16 %v879
        %v982 = vunpack.c.l.b16 %v880
        %v983 = vunpack.c.h.b16 %v880
        %v984 = vunpack.c.l.b16 %v881
        %v985 = vunpack.c.h.b16 %v881
        %v986 = vunpack.c.l.b16 %v882
        %v987 = vunpack.c.h.b16 %v882
        %v988 = vunpack.c.l.b16 %v883
        %v989 = vunpack.c.h.b16 %v883
        %v990 = vunpack.c.l.b16 %v884
        %v991 = vunpack.c.h.b16 %v884
        %v992 = vunpack.c.l.b16 %v885
        %v993 = vunpack.c.h.b16 %v885
        %v994 = vunpack.c.l.b16 %v886
        %v995 = vunpack.c.h.b16 %v886
        %v996 = vpack.c.b16 %v934, %v932
        %v997 = vpack.c.b16 %v935, %v933
        %v998 = vpack.c.b16 %v938, %v936
        %v999 = vpack.c.b16 %v939, %v937
        %v1000 = vpack.c.b16 %v942, %v940
        %v1001 = vpack.c.b16 %v943, %v941
        %v1002 = vpack.c.b16 %v946, %v944
        %v1003 = vpack.c.b16 %v947, %v945
        %v1004 = vpack.c.b16 %v950, %v948
        %v1005 = vpack.c.b16 %v951, %v949
        %v1006 = vpack.c.b16 %v954, %v952
        %v1007 = vpack.c.b16 %v955, %v953
        %v1008 = vpack.c.b16 %v958, %v956
        %v1009 = vpack.c.b16 %v959, %v957
        %v1010 = vpack.c.b16 %v962, %v960
        %v1011 = vpack.c.b16 %v963, %v961
        %v1012 = vpack.c.b16 %v966, %v964
        %v1013 = vpack.c.b16 %v967, %v965
        %v1014 = vpack.c.b16 %v970, %v968
        %v1015 = vpack.c.b16 %v971, %v969
        %v1016 = vpack.c.b16 %v974, %v972
        %v1017 = vpack.c.b16 %v975, %v973
        %v1018 = vpack.c.b16 %v978, %v976
        %v1019 = vpack.c.b16 %v979, %v977
        %v1020 = vpack.c.b16 %v982, %v980
        %v1021 = vpack.c.b16 %v983, %v981
        %v1022 = vpack.c.b16 %v986, %v984
        %v1023 = vpack.c.b16 %v987, %v985
        %v1024 = vpack.c.b16 %v990, %v988
        %v1025 = vpack.c.b16 %v991, %v989
        %v1026 = vpack.c.b16 %v994, %v992
        %v1027 = vpack.c.b16 %v995, %v993
        %1060 = vmatprep.subr.bf16.mxu0 %v997
        %1061 = vmatpush1.bf16.msra.mxu0 %v996
        %1062 = vmatprep.subr.bf16.mxu0 %v999
        %1063 = vmatpush1.bf16.msra.mxu0 %v998
        %1064 = vmatprep.subr.bf16.mxu0 %v1001
        %1065 = vmatpush1.bf16.msra.mxu0 %v1000
        %1066 = vmatprep.subr.bf16.mxu0 %v1003
        %1067 = vmatpush1.bf16.msra.mxu0 %v1002
        %1068 = vmatprep.subr.bf16.mxu0 %v1005
        %1069 = vmatpush1.bf16.msra.mxu0 %v1004
        %1070 = vmatprep.subr.bf16.mxu0 %v1007
        %1071 = vmatpush1.bf16.msra.mxu0 %v1006
        %1072 = vmatprep.subr.bf16.mxu0 %v1009
        %1073 = vmatpush1.bf16.msra.mxu0 %v1008
        %1074 = vmatprep.subr.bf16.mxu0 %v1011
        %1075 = vmatpush1.bf16.msra.mxu0 %v1010
        %1076 = vmatprep.subr.bf16.mxu0 %v1013
        %1077 = vmatpush1.bf16.msra.mxu0 %v1012
        %1078 = vmatprep.subr.bf16.mxu0 %v1015
        %1079 = vmatpush1.bf16.msra.mxu0 %v1014
        %1080 = vmatprep.subr.bf16.mxu0 %v1017
        %1081 = vmatpush1.bf16.msra.mxu0 %v1016
        %1082 = vmatprep.subr.bf16.mxu0 %v1019
        %1083 = vmatpush1.bf16.msra.mxu0 %v1018
        %1084 = vmatprep.subr.bf16.mxu0 %v1021
        %1085 = vmatpush1.bf16.msra.mxu0 %v1020
        %1086 = vmatprep.subr.bf16.mxu0 %v1023
        %1087 = vmatpush1.bf16.msra.mxu0 %v1022
        %1088 = vmatprep.subr.bf16.mxu0 %v1025
        %1089 = vmatpush1.bf16.msra.mxu0 %v1024
        %1090 = vmatprep.subr.bf16.mxu0 %v1027
        %1091 = vmatpush1.bf16.msra.mxu0 %v1026
        %1092 = vmatprep.mubr.bf16.mxu0 %v853
        %1093 = vmatmul.mubr.bf16.gmra.mrb[0].mxu0 %v852
        %v1094 = vpop.f32.mrb[0].mxu0
        %v1095 = vadd.f32 %v893, %v1094
        %v1096 = vpop.f32.mrb[0].mxu0
        %v1097 = vadd.f32 %v897, %v1096
        %v1098 = vpop.f32.mrb[0].mxu0
        %v1099 = vpop.f32.mrb[0].mxu0
        %1100 = vdwg.mxu0
        %v1101 = vmax.f32 %v1095, 0.0
        %v1102 = vmax.f32 %v1097, 0.0
        %v1103 = vpack.c.bf16 %v1101, %v1101
        %v1104 = vpack.c.bf16 %v1102, %v1102
        %v1105 = vld [vmem:[#allocation4] sm:$0xf]
        %v1106 = vld [vmem:[#allocation4 + $0x4] sm:$0xf]
        %v1107 = vld [vmem:[#allocation4 + $0x8] sm:$0xf]
        %v1108 = vld [vmem:[#allocation4 + $0xc] sm:$0xf]
        %v1109 = vld [vmem:[#allocation4 + $0x10] sm:$0xf]
        %v1110 = vld [vmem:[#allocation4 + $0x14] sm:$0xf]
        %v1111 = vld [vmem:[#allocation4 + $0x18] sm:$0xf]
        %v1112 = vld [vmem:[#allocation4 + $0x1c] sm:$0xf]
        %v1113 = vld [vmem:[#allocation4 + $0x20] sm:$0xf]
        %v1114 = vld [vmem:[#allocation4 + $0x24] sm:$0xf]
        %v1115 = vld [vmem:[#allocation4 + $0x28] sm:$0xf]
        %v1116 = vld [vmem:[#allocation4 + $0x2c] sm:$0xf]
        %v1117 = vld [vmem:[#allocation4 + $0x30] sm:$0xf]
        %v1118 = vld [vmem:[#allocation4 + $0x34] sm:$0xf]
        %v1119 = vld [vmem:[#allocation4 + $0x38] sm:$0xf]
        %v1120 = vld [vmem:[#allocation4 + $0x3c] sm:$0xf]
        %v1121 = vld [vmem:[#allocation4 + $0x40] sm:$0xf]
        %v1122 = vld [vmem:[#allocation4 + $0x44] sm:$0xf]
        %v1123 = vld [vmem:[#allocation4 + $0x48] sm:$0xf]
        %v1124 = vld [vmem:[#allocation4 + $0x4c] sm:$0xf]
        %v1125 = vld [vmem:[#allocation4 + $0x50] sm:$0xf]
        %v1126 = vld [vmem:[#allocation4 + $0x54] sm:$0xf]
        %v1127 = vld [vmem:[#allocation4 + $0x58] sm:$0xf]
        %v1128 = vld [vmem:[#allocation4 + $0x5c] sm:$0xf]
        %v1129 = vld [vmem:[#allocation4 + $0x60] sm:$0xf]
        %v1130 = vld [vmem:[#allocation4 + $0x64] sm:$0xf]
        %v1131 = vld [vmem:[#allocation4 + $0x68] sm:$0xf]
        %v1132 = vld [vmem:[#allocation4 + $0x6c] sm:$0xf]
        %v1133 = vld [vmem:[#allocation4 + $0x70] sm:$0xf]
        %v1134 = vld [vmem:[#allocation4 + $0x74] sm:$0xf]
        %v1135 = vld [vmem:[#allocation4 + $0x78] sm:$0xf]
        %v1136 = vld [vmem:[#allocation4 + $0x7c] sm:$0xf]
        %v1137 = vld [vmem:[%s5] sm:$0x1]
        %v1139 = vlaneseq
        %v1140 = vshrl.u32 %v1139, 7
        %v1141 = vsub.s32 0, %v1140
        %v1142 = vrot.slane %v1137, %v1141
        %v1176 = vunpack.c.l.b16 %v1105
        %v1177 = vunpack.c.l.b16 %v1106
        %v1178 = vunpack.c.l.b16 %v1107
        %v1179 = vunpack.c.l.b16 %v1108
        %v1180 = vunpack.c.l.b16 %v1109
        %v1181 = vunpack.c.l.b16 %v1110
        %v1182 = vunpack.c.l.b16 %v1111
        %v1183 = vunpack.c.l.b16 %v1112
        %v1184 = vunpack.c.l.b16 %v1113
        %v1185 = vunpack.c.l.b16 %v1114
        %v1186 = vunpack.c.l.b16 %v1115
        %v1187 = vunpack.c.l.b16 %v1116
        %v1188 = vunpack.c.l.b16 %v1117
        %v1189 = vunpack.c.l.b16 %v1118
        %v1190 = vunpack.c.l.b16 %v1119
        %v1191 = vunpack.c.l.b16 %v1120
        %v1192 = vunpack.c.l.b16 %v1121
        %v1193 = vunpack.c.l.b16 %v1122
        %v1194 = vunpack.c.l.b16 %v1123
        %v1195 = vunpack.c.l.b16 %v1124
        %v1196 = vunpack.c.l.b16 %v1125
        %v1197 = vunpack.c.l.b16 %v1126
        %v1198 = vunpack.c.l.b16 %v1127
        %v1199 = vunpack.c.l.b16 %v1128
        %v1200 = vunpack.c.l.b16 %v1129
        %v1201 = vunpack.c.l.b16 %v1130
        %v1202 = vunpack.c.l.b16 %v1131
        %v1203 = vunpack.c.l.b16 %v1132
        %v1204 = vunpack.c.l.b16 %v1133
        %v1205 = vunpack.c.l.b16 %v1134
        %v1206 = vunpack.c.l.b16 %v1135
        %v1207 = vunpack.c.l.b16 %v1136
        %v1208 = vpack.c.b16 %v1177, %v1176
        %v1209 = vpack.c.b16 %v1179, %v1178
        %v1210 = vpack.c.b16 %v1181, %v1180
        %v1211 = vpack.c.b16 %v1183, %v1182
        %v1212 = vpack.c.b16 %v1185, %v1184
        %v1213 = vpack.c.b16 %v1187, %v1186
        %v1214 = vpack.c.b16 %v1189, %v1188
        %v1215 = vpack.c.b16 %v1191, %v1190
        %v1216 = vpack.c.b16 %v1193, %v1192
        %v1217 = vpack.c.b16 %v1195, %v1194
        %v1218 = vpack.c.b16 %v1197, %v1196
        %v1219 = vpack.c.b16 %v1199, %v1198
        %v1220 = vpack.c.b16 %v1201, %v1200
        %v1221 = vpack.c.b16 %v1203, %v1202
        %v1222 = vpack.c.b16 %v1205, %v1204
        %v1223 = vpack.c.b16 %v1207, %v1206
        %1240 = vmatprep.subr.bf16.mxu0 0
        %1241 = vmatpush1.bf16.msra.mxu0 %v1208
        %1242 = vmatprep.subr.bf16.mxu0 0
        %1243 = vmatpush1.bf16.msra.mxu0 %v1209
        %1244 = vmatprep.subr.bf16.mxu0 0
        %1245 = vmatpush1.bf16.msra.mxu0 %v1210
        %1246 = vmatprep.subr.bf16.mxu0 0
        %1247 = vmatpush1.bf16.msra.mxu0 %v1211
        %1248 = vmatprep.subr.bf16.mxu0 0
        %1249 = vmatpush1.bf16.msra.mxu0 %v1212
        %1250 = vmatprep.subr.bf16.mxu0 0
        %1251 = vmatpush1.bf16.msra.mxu0 %v1213
        %1252 = vmatprep.subr.bf16.mxu0 0
        %1253 = vmatpush1.bf16.msra.mxu0 %v1214
        %1254 = vmatprep.subr.bf16.mxu0 0
        %1255 = vmatpush1.bf16.msra.mxu0 %v1215
        %1256 = vmatprep.subr.bf16.mxu0 0
        %1257 = vmatpush1.bf16.msra.mxu0 %v1216
        %1258 = vmatprep.subr.bf16.mxu0 0
        %1259 = vmatpush1.bf16.msra.mxu0 %v1217
        %1260 = vmatprep.subr.bf16.mxu0 0
        %1261 = vmatpush1.bf16.msra.mxu0 %v1218
        %1262 = vmatprep.subr.bf16.mxu0 0
        %1263 = vmatpush1.bf16.msra.mxu0 %v1219
        %1264 = vmatprep.subr.bf16.mxu0 0
        %1265 = vmatpush1.bf16.msra.mxu0 %v1220
        %1266 = vmatprep.subr.bf16.mxu0 0
        %1267 = vmatpush1.bf16.msra.mxu0 %v1221
        %1268 = vmatprep.subr.bf16.mxu0 0
        %1269 = vmatpush1.bf16.msra.mxu0 %v1222
        %1270 = vmatprep.subr.bf16.mxu0 0
        %1271 = vmatpush1.bf16.msra.mxu0 %v1223
        %1272 = vmatprep.mubr.bf16.mxu0 %v1104
        %1273 = vmatmul.mubr.bf16.gmra.mrb[0].mxu0 %v1103
        %v1274 = vpop.f32.mrb[0].mxu0
        %v1275 = vadd.f32 %v1142, %v1274
        %v1276 = vpop.f32.mrb[0].mxu0
        %v1277 = vpop.f32.mrb[0].mxu0
        %v1278 = vpop.f32.mrb[0].mxu0
        %1279 = vdwg.mxu0
        %v1280 = vpack.c.bf16 %v1275, %v1275
        %1281 = vst [vmem:[%s276] sm:$0xf] %v1280
        %p1282 = scmp.lt.s32.totalorder %s19, 1
        %s1283 = scalar_select %p1282, %s19, 1
        %s1284 = smul.addr %s1283, 4
        %s1285 = scalar_lea.vmem %s6, %s1284
        // Predicated region
        $region53: #{actor_critic_forward.1} parent=43 // pred_check
          %p1286 = pneg %p168
        $region54: #{actor_critic_forward.1} parent=43 // pred_check_branch
          %1288 = sbr.rel (%p1286) target = $region56
        $region55: #{actor_critic_forward.1} parent=43 // pred_region
          _
        $region56: #{actor_critic_forward.1} parent=43 // pred_fallthru
          _
      $region44: #{actor_critic_forward.1} parent=5 // pred_fallthru
        _
      %p1289 = scmp.le.s32.totalorder 2, %s14
      // Predicated region
      $region57: #{actor_critic_forward.1} parent=5 // pred_check
        %p1290 = pneg %p1289
      $region58: #{actor_critic_forward.1} parent=5 // pred_check_branch
        %1292 = sbr.rel (%p1290) target = $region60
      $region59: #{actor_critic_forward.1} parent=5 // pred_region
        %s1293 = ssub.s32 %s14, 2
        // Predicated region
        $region61: #{actor_critic_forward.1} parent=59 // pred_check
          %p1294 = pneg %p174
        $region62: #{actor_critic_forward.1} parent=59 // pred_check_branch
          %1296 = sbr.rel (%p1294) target = $region64
        $region63: #{actor_critic_forward.1} parent=59 // pred_region
          %p1297 = scmp.lt.s32.totalorder %s20, 1
          %s1298 = scalar_select %p1297, %s20, 1
          %s1299 = smul.addr %s1298, 4
          %s1300 = scalar_lea.vmem %s6, %s1299
        $region64: #{actor_critic_forward.1} parent=59 // pred_fallthru
          _
      $region60: #{actor_critic_forward.1} parent=5 // pred_fallthru
        _
    $region6: #{actor_critic_forward.1} parent=1 // loop_footer
      %s18 = sadd.s32 1, %s14
    $region7: #{actor_critic_forward.1} parent=1 // loop_footer_branch
      %13 = sbr.rel target = $region3
    $region8: #{actor_critic_forward.1} parent=1 // loop_exit
      _
    %1301 = vsyncpa [#allocation3], 1
    %s1302 = scalar_lea.sflag [#allocation3], 1
    %1303 = vsyncpa %s1302, 1
    %1304 = vsyncpa [#allocation5], 1

</llo_original>
